<compile_context>
chip_gen: v5e
topology: v5e:2x2
jax: 0.10.0
libtpu: 0.0.40
codegen_flags: <defaults>
</compile_context>

<pallas_src>
import jax
import jax.numpy as jnp
from jax.experimental import pallas as pl
from jax.experimental.pallas import tpu as pltpu

EPS = 1e-5


def _round_up(x, m):
    return (x + m - 1) // m * m


# ---------------------------------------------------------------------------
# Kernel: L+1 fused (matmul + bias [+ ReLU]) layers on one (TB, F) batch tile.
# ---------------------------------------------------------------------------
def _make_kernel(num_layers):
    def kernel(x_ref, w_ref, b_ref, o_ref):
        compute_dtype = w_ref.dtype          # bf16 or f32 MXU operands
        h = x_ref[...]                       # (TB, F), compute dtype
        for l in range(num_layers - 1):
            z = jnp.dot(h, w_ref[l], preferred_element_type=jnp.float32)
            z = z + b_ref[l:l + 1, :]        # f32 bias add (VPU, f32 on all gens)
            h = jnp.maximum(z, 0.0).astype(compute_dtype)
        z = jnp.dot(h, w_ref[num_layers - 1], preferred_element_type=jnp.float32)
        o_ref[...] = z + b_ref[num_layers - 1:num_layers, :]   # lane-dense f32 store
    return kernel


# ---------------------------------------------------------------------------
# Wrapper-side parameter prep: fold eval-mode BatchNorm into the next Linear.
#   BN(h) = s*h + t  with  s = gamma*rsqrt(var+eps), t = beta - s*mean
#   BN(h) @ W + b    =  h @ (s[:,None]*W)  +  (b + t @ W)
# ---------------------------------------------------------------------------
def _fold_batchnorm(flat_params, num_hidden):
    Ws, bs = [], []
    idx = 0
    scale = shift = None
    for _ in range(num_hidden):
        w, b, g, be, m, v = flat_params[idx:idx + 6]
        idx += 6
        if scale is not None:
            b = b + shift @ w
            w = scale.reshape(-1, 1) * w
        Ws.append(w)
        bs.append(b)
        s = g * jax.lax.rsqrt(v + EPS)       # (1, h)
        scale, shift = s, be - s * m
    w, b = flat_params[idx:idx + 2]          # final Linear: fold last BN here
    b = b + shift @ w
    w = scale.reshape(-1, 1) * w
    Ws.append(w)
    bs.append(b)
    return Ws, bs


def lightning_predictor_forward(x, flat_params, use_bf16=False, tile_batch=256):
    """x: (B, input_size) float32.  flat_params: torch-layout param list."""
    B, in_features = x.shape
    num_hidden = (len(flat_params) - 2) // 6
    Ws, bs = _fold_batchnorm(flat_params, num_hidden)
    L = num_hidden + 1

    compute_dtype = jnp.bfloat16 if use_bf16 else jnp.float32
    # Pad every feature dim to a multiple of 128 (lane-dense) and pack.
    F = _round_up(max([in_features] + [w.shape[1] for w in Ws]), 128)
    w_stack = jnp.zeros((L, F, F), jnp.float32)
    b_stack = jnp.zeros((L, F), jnp.float32)
    for l, (w, b) in enumerate(zip(Ws, bs)):
        w_stack = w_stack.at[l, :w.shape[0], :w.shape[1]].set(w)
        b_stack = b_stack.at[l, :b.shape[1]].set(b[0])
    w_stack = w_stack.astype(compute_dtype)

    # Batch tiling (TB multiple of 16 so f32 and bf16 tiles are both legal).
    TB = min(tile_batch, _round_up(B, 16))
    B_pad = _round_up(B, TB)
    xp = jnp.zeros((B_pad, F), compute_dtype)
    xp = xp.at[:B, :in_features].set(x.astype(compute_dtype))

    # VMEM footprint (params + 2x double-buffered (TB,F) tiles) is well under
    # the 32 MiB default scoped limit on all generations, incl. v7x's 64 MiB.
    out = pl.pallas_call(
        _make_kernel(L),
        out_shape=jax.ShapeDtypeStruct((B_pad, F), jnp.float32),
        grid=(B_pad // TB,),
        in_specs=[
            pl.BlockSpec((TB, F), lambda i: (i, 0)),          # batch-tiled x
            pl.BlockSpec((L, F, F), lambda i: (0, 0, 0)),     # resident weights
            pl.BlockSpec((L, F), lambda i: (0, 0)),           # resident biases
        ],
        out_specs=pl.BlockSpec((TB, F), lambda i: (i, 0)),
        compiler_params=pltpu.CompilerParams(
            dimension_semantics=("parallel",)),
    )(xp, w_stack, b_stack)
    return out[:B, :1]


# ---------------------------------------------------------------------------
# Deterministic synthetic params + pure-JAX eval-mode reference.
# ---------------------------------------------------------------------------
def init_params(key, input_size, hidden_sizes):
    params = []
    prev = input_size
    for h in hidden_sizes:
        key, kw, kb, kg, kbe, km, kv = jax.random.split(key, 7)
        w = jax.random.normal(kw, (prev, h), jnp.float32) * (1.0 / jnp.sqrt(prev))
        b = jax.random.normal(kb, (1, h), jnp.float32) * 0.1
        gamma = 1.0 + 0.1 * jax.random.normal(kg, (1, h), jnp.float32)
        beta = 0.1 * jax.random.normal(kbe, (1, h), jnp.float32)
        r_mean = 0.1 * jax.random.normal(km, (1, h), jnp.float32)
        r_var = 0.5 + jax.random.uniform(kv, (1, h), jnp.float32)   # > 0
        params.extend([w, b, gamma, beta, r_mean, r_var])
        prev = h
    key, kw, kb = jax.random.split(key, 3)
    w_out = jax.random.normal(kw, (prev, 1), jnp.float32) * (1.0 / jnp.sqrt(prev))
    b_out = jax.random.normal(kb, (1, 1), jnp.float32) * 0.1
    params.extend([w_out, b_out])
    return params


def reference_forward(x, flat_params, hidden_sizes):
    h = x
    idx = 0
    for _ in hidden_sizes:
        w, b, g, be, m, v = flat_params[idx:idx + 6]
        idx += 6
        h = h @ w + b
        h = jnp.maximum(h, 0.0)
        h = (h - m) / jnp.sqrt(v + EPS) * g + be
    w, b = flat_params[idx:idx + 2]
    return h @ w + b


if __name__ == "__main__":
    input_size = 16
    hidden_sizes = [128, 64, 32]

    key = jax.random.PRNGKey(0)
    key, kx = jax.random.split(key)
    params = init_params(key, input_size, hidden_sizes)

    # Small batch: single grid step after padding to the 16-row tile.
    x_small = jax.random.normal(kx, (8, input_size), jnp.float32)
    out = jax.block_until_ready(lightning_predictor_forward(x_small, params))
    ref = reference_forward(x_small, params, hidden_sizes)
    assert out.shape == (8, 1)
    assert jnp.allclose(out, ref, atol=1e-4, rtol=1e-4), "f32 mismatch (small batch)"

    # Ragged larger batch: exercises multi-step grid + batch padding.
    key, kx2 = jax.random.split(key)
    x_big = jax.random.normal(kx2, (300, input_size), jnp.float32)
    out_big = jax.block_until_ready(lightning_predictor_forward(x_big, params))
    ref_big = reference_forward(x_big, params, hidden_sizes)
    assert out_big.shape == (300, 1)
    assert jnp.allclose(out_big, ref_big, atol=1e-4, rtol=1e-4), "f32 mismatch (tiled batch)"

    # bf16 MXU operands (v6e/v7x fast path); elementwise stays f32.
    out_bf16 = jax.block_until_ready(
        lightning_predictor_forward(x_small, params, use_bf16=True))
    assert jnp.allclose(out_bf16, ref, atol=1e-1, rtol=1e-1), "bf16 mismatch"

    print("KERNEL_OK")
</pallas_src>

<mosaic_0001>
module attributes {stable_mosaic.version = 11 : i64} {
  func.func @kernel(%arg0: i32, %arg1: memref<16x128xf32, #tpu.memory_space<vmem>>, %arg2: memref<4x128x128xf32, #tpu.memory_space<vmem>>, %arg3: memref<4x128xf32, #tpu.memory_space<vmem>>, %arg4: memref<16x128xf32, #tpu.memory_space<vmem>>) attributes {dimension_semantics = [#tpu.dimension_semantics<parallel>], iteration_bounds = array<i64: 1>, scalar_prefetch = 0 : i64, scratch_operands = 0 : i64, tpu.core_type = #tpu.core_type<tc>, window_params = [{transform_indices = @transform_0, window_bounds = array<i64: 16, 128>}, {pipeline_mode = #tpu.pipeline_mode<synchronous>, transform_indices = @transform_1, window_bounds = array<i64: 4, 128, 128>}, {pipeline_mode = #tpu.pipeline_mode<synchronous>, transform_indices = @transform_2, window_bounds = array<i64: 4, 128>}, {transform_indices = @transform_3, window_bounds = array<i64: 16, 128>}]} {
    %c0 = arith.constant 0 : index
    %c0_0 = arith.constant 0 : index
    %0 = vector.load %arg1[%c0, %c0_0] : memref<16x128xf32, #tpu.memory_space<vmem>>, vector<16x128xf32>
    %c0_1 = arith.constant 0 : index
    %c0_2 = arith.constant 0 : index
    %c0_3 = arith.constant 0 : index
    %1 = vector.load %arg2[%c0_1, %c0_2, %c0_3] : memref<4x128x128xf32, #tpu.memory_space<vmem>>, vector<1x128x128xf32>
    %2 = vector.shape_cast %1 : vector<1x128x128xf32> to vector<128x128xf32>
    %cst = arith.constant dense<0.000000e+00> : vector<16x128xf32>
    %3 = tpu.matmul %0, %2, %cst {dimension_numbers = #tpu.dot_dimension_numbers<[1], [0], [0], [1], [0, 0, 1, 1], [], []>} : vector<16x128xf32>, vector<128x128xf32>, vector<16x128xf32> -> vector<16x128xf32>
    %c0_4 = arith.constant 0 : index
    %c0_5 = arith.constant 0 : index
    %4 = vector.load %arg3[%c0_4, %c0_5] : memref<4x128xf32, #tpu.memory_space<vmem>>, vector<1x128xf32>
    %5 = vector.broadcast %4 : vector<1x128xf32> to vector<16x128xf32>
    %6 = arith.addf %3, %5 : vector<16x128xf32>
    %cst_6 = arith.constant 0.000000e+00 : f32
    %7 = vector.broadcast %cst_6 : f32 to vector<16x128xf32>
    %8 = arith.maximumf %6, %7 : vector<16x128xf32>
    %c1 = arith.constant 1 : index
    %c0_7 = arith.constant 0 : index
    %c0_8 = arith.constant 0 : index
    %9 = vector.load %arg2[%c1, %c0_7, %c0_8] : memref<4x128x128xf32, #tpu.memory_space<vmem>>, vector<1x128x128xf32>
    %10 = vector.shape_cast %9 : vector<1x128x128xf32> to vector<128x128xf32>
    %cst_9 = arith.constant dense<0.000000e+00> : vector<16x128xf32>
    %11 = tpu.matmul %8, %10, %cst_9 {dimension_numbers = #tpu.dot_dimension_numbers<[1], [0], [0], [1], [0, 0, 1, 1], [], []>} : vector<16x128xf32>, vector<128x128xf32>, vector<16x128xf32> -> vector<16x128xf32>
    %c1_10 = arith.constant 1 : index
    %c0_11 = arith.constant 0 : index
    %12 = vector.load %arg3[%c1_10, %c0_11] : memref<4x128xf32, #tpu.memory_space<vmem>>, vector<1x128xf32>
    %13 = vector.broadcast %12 : vector<1x128xf32> to vector<16x128xf32>
    %14 = arith.addf %11, %13 : vector<16x128xf32>
    %cst_12 = arith.constant 0.000000e+00 : f32
    %15 = vector.broadcast %cst_12 : f32 to vector<16x128xf32>
    %16 = arith.maximumf %14, %15 : vector<16x128xf32>
    %c2 = arith.constant 2 : index
    %c0_13 = arith.constant 0 : index
    %c0_14 = arith.constant 0 : index
    %17 = vector.load %arg2[%c2, %c0_13, %c0_14] : memref<4x128x128xf32, #tpu.memory_space<vmem>>, vector<1x128x128xf32>
    %18 = vector.shape_cast %17 : vector<1x128x128xf32> to vector<128x128xf32>
    %cst_15 = arith.constant dense<0.000000e+00> : vector<16x128xf32>
    %19 = tpu.matmul %16, %18, %cst_15 {dimension_numbers = #tpu.dot_dimension_numbers<[1], [0], [0], [1], [0, 0, 1, 1], [], []>} : vector<16x128xf32>, vector<128x128xf32>, vector<16x128xf32> -> vector<16x128xf32>
    %c2_16 = arith.constant 2 : index
    %c0_17 = arith.constant 0 : index
    %20 = vector.load %arg3[%c2_16, %c0_17] : memref<4x128xf32, #tpu.memory_space<vmem>>, vector<1x128xf32>
    %21 = vector.broadcast %20 : vector<1x128xf32> to vector<16x128xf32>
    %22 = arith.addf %19, %21 : vector<16x128xf32>
    %cst_18 = arith.constant 0.000000e+00 : f32
    %23 = vector.broadcast %cst_18 : f32 to vector<16x128xf32>
    %24 = arith.maximumf %22, %23 : vector<16x128xf32>
    %c3 = arith.constant 3 : index
    %c0_19 = arith.constant 0 : index
    %c0_20 = arith.constant 0 : index
    %25 = vector.load %arg2[%c3, %c0_19, %c0_20] : memref<4x128x128xf32, #tpu.memory_space<vmem>>, vector<1x128x128xf32>
    %26 = vector.shape_cast %25 : vector<1x128x128xf32> to vector<128x128xf32>
    %cst_21 = arith.constant dense<0.000000e+00> : vector<16x128xf32>
    %27 = tpu.matmul %24, %26, %cst_21 {dimension_numbers = #tpu.dot_dimension_numbers<[1], [0], [0], [1], [0, 0, 1, 1], [], []>} : vector<16x128xf32>, vector<128x128xf32>, vector<16x128xf32> -> vector<16x128xf32>
    %c3_22 = arith.constant 3 : index
    %c0_23 = arith.constant 0 : index
    %28 = vector.load %arg3[%c3_22, %c0_23] : memref<4x128xf32, #tpu.memory_space<vmem>>, vector<1x128xf32>
    %29 = vector.broadcast %28 : vector<1x128xf32> to vector<16x128xf32>
    %30 = arith.addf %27, %29 : vector<16x128xf32>
    %c0_24 = arith.constant 0 : index
    %c0_25 = arith.constant 0 : index
    %31 = vector.load %arg4[%c0_24, %c0_25] : memref<16x128xf32, #tpu.memory_space<vmem>>, vector<16x128xf32>
    tpu.vector_store %arg4[%c0_24, %c0_25], %30 {strides = array<i32>} : memref<16x128xf32, #tpu.memory_space<vmem>>, vector<16x128xf32>,
    return
  }
  func.func @transform_0(%arg0: i32) -> (i32, i32) {
    %c0_i32 = arith.constant 0 : i32
    %c0_i32_0 = arith.constant 0 : i32
    return %arg0, %c0_i32 : i32, i32
  }
  func.func @transform_1(%arg0: i32) -> (i32, i32, i32) {
    %c0_i32 = arith.constant 0 : i32
    %c0_i32_0 = arith.constant 0 : i32
    %c0_i32_1 = arith.constant 0 : i32
    %c0_i32_2 = arith.constant 0 : i32
    return %c0_i32, %c0_i32_0, %c0_i32_1 : i32, i32, i32
  }
  func.func @transform_2(%arg0: i32) -> (i32, i32) {
    %c0_i32 = arith.constant 0 : i32
    %c0_i32_0 = arith.constant 0 : i32
    %c0_i32_1 = arith.constant 0 : i32
    return %c0_i32, %c0_i32_0 : i32, i32
  }
  func.func @transform_3(%arg0: i32) -> (i32, i32) {
    %c0_i32 = arith.constant 0 : i32
    %c0_i32_0 = arith.constant 0 : i32
    return %arg0, %c0_i32 : i32, i32
  }
}

</mosaic_0001>

<llo_original>
// kernel: tpu_custom_call.1
$region0: #{tpu_custom_call.1}
  #allocation0 [shape = 'u32[]', space=smem, size = 0x4, offset = 0x4, fixed_abs, tag = 'smem constant byte address 0x4 - core index']
  #allocation1 [shape = 'u32[72,128]{1,0:T(1,128)}', space=vmem, size = 0x9000, scoped, tag = 'internal scratch']
  %s0 = inlined_call_operand.hbm [shape: f32[16,128], index: 0, kind: input, shape index: {}]
  %s1 = inlined_call_operand.hbm [shape: f32[4,128,128], index: 1, kind: input, shape index: {}]
  %s2 = inlined_call_operand.hbm [shape: f32[4,128], index: 2, kind: input, shape index: {}]
  %s3 = inlined_call_operand.hbm [shape: f32[16,128], index: 3, kind: output, shape index: {}]
  %s4 = sld [smem:[#allocation0]]
  $region34: #{tpu_custom_call.1} parent=0
    _
  %s6 = ssub.s32 1, %s4
  %s7 = scalar_select 0, %s6, %s4
  $region1: #{tpu_custom_call.1} parent=0
    #allocation2 [shape = 'u8[8192]{0}', space=vmem, size = 0x2000, scoped, tag = 'input window, operand 0, single buffered']
    #allocation3 [shape = 's32[1]{0}', space=sflag, size = 0x4, scoped, tag = 'scoped memory for tpu_custom_call.1']
    #allocation4 [shape = 's32[1]{0}', space=sflag, size = 0x4, scoped, tag = 'scoped memory for tpu_custom_call.1']
    #allocation5 [shape = 'u8[262144]{0}', space=vmem, size = 0x40000, scoped, tag = 'input window, operand 1, single buffered']
    #allocation6 [shape = 's32[1]{0}', space=sflag, size = 0x4, scoped, tag = 'scoped memory for tpu_custom_call.1']
    #allocation7 [shape = 'u8[2048]{0}', space=vmem, size = 0x800, scoped, tag = 'input window, operand 2, single buffered']
    #allocation8 [shape = 'u8[8192]{0}', space=vmem, size = 0x2000, scoped, tag = 'output window, operand 0, single buffered']
    %8 = vsyncpa [#allocation3], 0
    %9 = vsyncpa [#allocation6], 0
    %10 = vsyncpa [#allocation4], 0
    // Predicated region
    $region2: #{tpu_custom_call.1} parent=1 // pred_check
      _
    $region3: #{tpu_custom_call.1} parent=1 // pred_check_branch
      %12 = sbr.rel (0) target = $region5
    $region4: #{tpu_custom_call.1} parent=1 // pred_region
      %14 = vsyncadd [#allocation3], 0
      %s15 = sshll.u32 %s0, 4
      %s16 = int_to_ptr.hbm [resolvable:$true] %s15
      %s17 = sshll.u32 [#allocation2], 4
      %s18 = int_to_ptr.vmem [resolvable:$true] %s17
      %23 = dma.hbm_to_vmem [thread:$0]  %s16, 256, %s18, [#allocation3], 128, 128, 8
    $region5: #{tpu_custom_call.1} parent=1 // pred_fallthru
      _
    // Predicated region
    $region6: #{tpu_custom_call.1} parent=1 // pred_check
      _
    $region7: #{tpu_custom_call.1} parent=1 // pred_check_branch
      %25 = sbr.rel (0) target = $region9
    $region8: #{tpu_custom_call.1} parent=1 // pred_region
      %27 = vsyncadd [#allocation6], 0
      %s28 = sshll.u32 %s1, 4
      %s29 = int_to_ptr.hbm [resolvable:$true] %s28
      %s30 = sshll.u32 [#allocation5], 4
      %s31 = int_to_ptr.vmem [resolvable:$true] %s30
      %36 = dma.hbm_to_vmem [thread:$0]  %s29, 8192, %s31, [#allocation6], 128, 128, 8
    $region9: #{tpu_custom_call.1} parent=1 // pred_fallthru
      _
    // Predicated region
    $region10: #{tpu_custom_call.1} parent=1 // pred_check
      _
    $region11: #{tpu_custom_call.1} parent=1 // pred_check_branch
      %38 = sbr.rel (0) target = $region13
    $region12: #{tpu_custom_call.1} parent=1 // pred_region
      %40 = vsyncadd [#allocation6], 0
      %s42 = sshll.u32 %s2, 4
      %s43 = int_to_ptr.hbm [resolvable:$true] %s42
      %s44 = sshll.u32 [#allocation7], 4
      %s45 = int_to_ptr.vmem [resolvable:$true] %s44
      %47 = dma.hbm_to_vmem [thread:$0]  %s43, 64, %s45, [#allocation6]
    $region13: #{tpu_custom_call.1} parent=1 // pred_fallthru
      _
    // Predicated region
    $region14: #{tpu_custom_call.1} parent=1 // pred_check
      _
    $region15: #{tpu_custom_call.1} parent=1 // pred_check_branch
      %49 = sbr.rel (0) target = $region17
    $region16: #{tpu_custom_call.1} parent=1 // pred_region
      %51 = dma.done [#allocation3], 256
    $region17: #{tpu_custom_call.1} parent=1 // pred_fallthru
      _
    // Predicated region
    $region18: #{tpu_custom_call.1} parent=1 // pred_check
      _
    $region19: #{tpu_custom_call.1} parent=1 // pred_check_branch
      %53 = sbr.rel (0) target = $region21
    $region20: #{tpu_custom_call.1} parent=1 // pred_region
      %55 = dma.done [#allocation6], 8192
    $region21: #{tpu_custom_call.1} parent=1 // pred_fallthru
      _
    // Predicated region
    $region22: #{tpu_custom_call.1} parent=1 // pred_check
      _
    $region23: #{tpu_custom_call.1} parent=1 // pred_check_branch
      %57 = sbr.rel (0) target = $region25
    $region24: #{tpu_custom_call.1} parent=1 // pred_region
      %59 = dma.done [#allocation6], 64
    $region25: #{tpu_custom_call.1} parent=1 // pred_fallthru
      _
    %v60 = vld [vmem:[#allocation2] sm:$0xff]
    %v61 = vld [vmem:[#allocation2 + $0x8] sm:$0xff]
    %v62 = vld [vmem:[#allocation5] sm:$0xff]
    %v63 = vld [vmem:[#allocation5 + $0x8] sm:$0xff]
    %v64 = vld [vmem:[#allocation5 + $0x10] sm:$0xff]
    %v65 = vld [vmem:[#allocation5 + $0x18] sm:$0xff]
    %v66 = vld [vmem:[#allocation5 + $0x20] sm:$0xff]
    %v67 = vld [vmem:[#allocation5 + $0x28] sm:$0xff]
    %v68 = vld [vmem:[#allocation5 + $0x30] sm:$0xff]
    %v69 = vld [vmem:[#allocation5 + $0x38] sm:$0xff]
    %v70 = vld [vmem:[#allocation5 + $0x40] sm:$0xff]
    %v71 = vld [vmem:[#allocation5 + $0x48] sm:$0xff]
    %v72 = vld [vmem:[#allocation5 + $0x50] sm:$0xff]
    %v73 = vld [vmem:[#allocation5 + $0x58] sm:$0xff]
    %v74 = vld [vmem:[#allocation5 + $0x60] sm:$0xff]
    %v75 = vld [vmem:[#allocation5 + $0x68] sm:$0xff]
    %v76 = vld [vmem:[#allocation5 + $0x70] sm:$0xff]
    %v77 = vld [vmem:[#allocation5 + $0x78] sm:$0xff]
    %v78 = vld [vmem:[#allocation7] sm:$0x1]
    %v79 = vperm.slane %v78, 0
    %80 = vmatpush.msra.mxu0 %v77
    %81 = vmatpush.msra.mxu0 %v76
    %82 = vmatpush.msra.mxu0 %v75
    %83 = vmatpush.msra.mxu0 %v74
    %84 = vmatpush.msra.mxu0 %v73
    %85 = vmatpush.msra.mxu0 %v72
    %86 = vmatpush.msra.mxu0 %v71
    %87 = vmatpush.msra.mxu0 %v70
    %88 = vmatpush.msra.mxu0 %v69
    %89 = vmatpush.msra.mxu0 %v68
    %90 = vmatpush.msra.mxu0 %v67
    %91 = vmatpush.msra.mxu0 %v66
    %92 = vmatpush.msra.mxu0 %v65
    %93 = vmatpush.msra.mxu0 %v64
    %94 = vmatpush.msra.mxu0 %v63
    %95 = vmatpush.msra.mxu0 %v62
    %96 = vmatmul.f32.gmra.mxu0 %v60
    %v97 = vpop.f32.mrf.mxu0
    %v98 = vadd.f32 %v79, %v97
    %99 = vmatmul.f32.gmra.mxu0 %v61
    %v100 = vpop.f32.mrf.mxu0
    %v101 = vadd.f32 %v79, %v100
    %102 = vdwg.mxu0
    %v103 = vmax.f32 %v98, 0.0
    %v104 = vmax.f32 %v101, 0.0
    %s105 = scalar_lea.vmem [#allocation5], 128
    %v106 = vld [vmem:[%s105] sm:$0xff]
    %v107 = vld [vmem:[%s105 + $0x8] sm:$0xff]
    %v108 = vld [vmem:[%s105 + $0x10] sm:$0xff]
    %v109 = vld [vmem:[%s105 + $0x18] sm:$0xff]
    %v110 = vld [vmem:[%s105 + $0x20] sm:$0xff]
    %v111 = vld [vmem:[%s105 + $0x28] sm:$0xff]
    %v112 = vld [vmem:[%s105 + $0x30] sm:$0xff]
    %v113 = vld [vmem:[%s105 + $0x38] sm:$0xff]
    %v114 = vld [vmem:[%s105 + $0x40] sm:$0xff]
    %v115 = vld [vmem:[%s105 + $0x48] sm:$0xff]
    %v116 = vld [vmem:[%s105 + $0x50] sm:$0xff]
    %v117 = vld [vmem:[%s105 + $0x58] sm:$0xff]
    %v118 = vld [vmem:[%s105 + $0x60] sm:$0xff]
    %v119 = vld [vmem:[%s105 + $0x68] sm:$0xff]
    %v120 = vld [vmem:[%s105 + $0x70] sm:$0xff]
    %v121 = vld [vmem:[%s105 + $0x78] sm:$0xff]
    %v122 = vld [vmem:[#allocation7 + $0x1] sm:$0x1]
    %v123 = vperm.slane %v122, 0
    %124 = vmatpush.msra.mxu0 %v121
    %125 = vmatpush.msra.mxu0 %v120
    %126 = vmatpush.msra.mxu0 %v119
    %127 = vmatpush.msra.mxu0 %v118
    %128 = vmatpush.msra.mxu0 %v117
    %129 = vmatpush.msra.mxu0 %v116
    %130 = vmatpush.msra.mxu0 %v115
    %131 = vmatpush.msra.mxu0 %v114
    %132 = vmatpush.msra.mxu0 %v113
    %133 = vmatpush.msra.mxu0 %v112
    %134 = vmatpush.msra.mxu0 %v111
    %135 = vmatpush.msra.mxu0 %v110
    %136 = vmatpush.msra.mxu0 %v109
    %137 = vmatpush.msra.mxu0 %v108
    %138 = vmatpush.msra.mxu0 %v107
    %139 = vmatpush.msra.mxu0 %v106
    %140 = vmatmul.f32.gmra.mxu0 %v103
    %v141 = vpop.f32.mrf.mxu0
    %v142 = vadd.f32 %v123, %v141
    %143 = vmatmul.f32.gmra.mxu0 %v104
    %v144 = vpop.f32.mrf.mxu0
    %v145 = vadd.f32 %v123, %v144
    %146 = vdwg.mxu0
    %v147 = vmax.f32 %v142, 0.0
    %v148 = vmax.f32 %v145, 0.0
    %s149 = scalar_lea.vmem [#allocation5], 256
    %v150 = vld [vmem:[%s149] sm:$0xff]
    %v151 = vld [vmem:[%s149 + $0x8] sm:$0xff]
    %v152 = vld [vmem:[%s149 + $0x10] sm:$0xff]
    %v153 = vld [vmem:[%s149 + $0x18] sm:$0xff]
    %v154 = vld [vmem:[%s149 + $0x20] sm:$0xff]
    %v155 = vld [vmem:[%s149 + $0x28] sm:$0xff]
    %v156 = vld [vmem:[%s149 + $0x30] sm:$0xff]
    %v157 = vld [vmem:[%s149 + $0x38] sm:$0xff]
    %v158 = vld [vmem:[%s149 + $0x40] sm:$0xff]
    %v159 = vld [vmem:[%s149 + $0x48] sm:$0xff]
    %v160 = vld [vmem:[%s149 + $0x50] sm:$0xff]
    %v161 = vld [vmem:[%s149 + $0x58] sm:$0xff]
    %v162 = vld [vmem:[%s149 + $0x60] sm:$0xff]
    %v163 = vld [vmem:[%s149 + $0x68] sm:$0xff]
    %v164 = vld [vmem:[%s149 + $0x70] sm:$0xff]
    %v165 = vld [vmem:[%s149 + $0x78] sm:$0xff]
    %v166 = vld [vmem:[#allocation7 + $0x2] sm:$0x1]
    %v167 = vperm.slane %v166, 0
    %168 = vmatpush.msra.mxu0 %v165
    %169 = vmatpush.msra.mxu0 %v164
    %170 = vmatpush.msra.mxu0 %v163
    %171 = vmatpush.msra.mxu0 %v162
    %172 = vmatpush.msra.mxu0 %v161
    %173 = vmatpush.msra.mxu0 %v160
    %174 = vmatpush.msra.mxu0 %v159
    %175 = vmatpush.msra.mxu0 %v158
    %176 = vmatpush.msra.mxu0 %v157
    %177 = vmatpush.msra.mxu0 %v156
    %178 = vmatpush.msra.mxu0 %v155
    %179 = vmatpush.msra.mxu0 %v154
    %180 = vmatpush.msra.mxu0 %v153
    %181 = vmatpush.msra.mxu0 %v152
    %182 = vmatpush.msra.mxu0 %v151
    %183 = vmatpush.msra.mxu0 %v150
    %184 = vmatmul.f32.gmra.mxu0 %v147
    %v185 = vpop.f32.mrf.mxu0
    %v186 = vadd.f32 %v167, %v185
    %187 = vmatmul.f32.gmra.mxu0 %v148
    %v188 = vpop.f32.mrf.mxu0
    %v189 = vadd.f32 %v167, %v188
    %190 = vdwg.mxu0
    %v191 = vmax.f32 %v186, 0.0
    %v192 = vmax.f32 %v189, 0.0
    %s193 = scalar_lea.vmem [#allocation5], 384
    %v194 = vld [vmem:[%s193] sm:$0xff]
    %v195 = vld [vmem:[%s193 + $0x8] sm:$0xff]
    %v196 = vld [vmem:[%s193 + $0x10] sm:$0xff]
    %v197 = vld [vmem:[%s193 + $0x18] sm:$0xff]
    %v198 = vld [vmem:[%s193 + $0x20] sm:$0xff]
    %v199 = vld [vmem:[%s193 + $0x28] sm:$0xff]
    %v200 = vld [vmem:[%s193 + $0x30] sm:$0xff]
    %v201 = vld [vmem:[%s193 + $0x38] sm:$0xff]
    %v202 = vld [vmem:[%s193 + $0x40] sm:$0xff]
    %v203 = vld [vmem:[%s193 + $0x48] sm:$0xff]
    %v204 = vld [vmem:[%s193 + $0x50] sm:$0xff]
    %v205 = vld [vmem:[%s193 + $0x58] sm:$0xff]
    %v206 = vld [vmem:[%s193 + $0x60] sm:$0xff]
    %v207 = vld [vmem:[%s193 + $0x68] sm:$0xff]
    %v208 = vld [vmem:[%s193 + $0x70] sm:$0xff]
    %v209 = vld [vmem:[%s193 + $0x78] sm:$0xff]
    %v210 = vld [vmem:[#allocation7 + $0x3] sm:$0x1]
    %v211 = vperm.slane %v210, 0
    %212 = vmatpush.msra.mxu0 %v209
    %213 = vmatpush.msra.mxu0 %v208
    %214 = vmatpush.msra.mxu0 %v207
    %215 = vmatpush.msra.mxu0 %v206
    %216 = vmatpush.msra.mxu0 %v205
    %217 = vmatpush.msra.mxu0 %v204
    %218 = vmatpush.msra.mxu0 %v203
    %219 = vmatpush.msra.mxu0 %v202
    %220 = vmatpush.msra.mxu0 %v201
    %221 = vmatpush.msra.mxu0 %v200
    %222 = vmatpush.msra.mxu0 %v199
    %223 = vmatpush.msra.mxu0 %v198
    %224 = vmatpush.msra.mxu0 %v197
    %225 = vmatpush.msra.mxu0 %v196
    %226 = vmatpush.msra.mxu0 %v195
    %227 = vmatpush.msra.mxu0 %v194
    %228 = vmatmul.f32.gmra.mxu0 %v191
    %v229 = vpop.f32.mrf.mxu0
    %v230 = vadd.f32 %v211, %v229
    %231 = vmatmul.f32.gmra.mxu0 %v192
    %v232 = vpop.f32.mrf.mxu0
    %v233 = vadd.f32 %v211, %v232
    %234 = vdwg.mxu0
    %235 = vst [vmem:[#allocation8] sm:$0xff] %v230
    %236 = vst [vmem:[#allocation8 + $0x8] sm:$0xff] %v233
    // Predicated region
    $region26: #{tpu_custom_call.1} parent=1 // pred_check
      _
    $region27: #{tpu_custom_call.1} parent=1 // pred_check_branch
      %238 = sbr.rel (0) target = $region29
    $region28: #{tpu_custom_call.1} parent=1 // pred_region
      %240 = vsyncadd [#allocation4], 0
      %s241 = sshll.u32 [#allocation8], 4
      %s242 = int_to_ptr.vmem [resolvable:$true] %s241
      %s243 = sshll.u32 %s3, 4
      %s244 = int_to_ptr.hbm [resolvable:$true] %s243
      %249 = dma.vmem_to_hbm [thread:$0]  %s242, 256, %s244, [#allocation4], 128, 128, 8
    $region29: #{tpu_custom_call.1} parent=1 // pred_fallthru
      _
    // Predicated region
    $region30: #{tpu_custom_call.1} parent=1 // pred_check
      _
    $region31: #{tpu_custom_call.1} parent=1 // pred_check_branch
      %251 = sbr.rel (0) target = $region33
    $region32: #{tpu_custom_call.1} parent=1 // pred_region
      %253 = dma.done [#allocation4], 256
    $region33: #{tpu_custom_call.1} parent=1 // pred_fallthru
      _
    %254 = vsyncpa [#allocation3], 1
    %255 = vsyncpa [#allocation6], 1
    %256 = vsyncpa [#allocation4], 1

</llo_original>
